<compile_context>
chip_gen: v5e
topology: v5e:2x2
jax: 0.10.0
libtpu: 0.0.40
codegen_flags: <defaults>
</compile_context>

<pallas_src>
import jax
import jax.numpy as jnp
from jax.experimental import pallas as pl
from jax.experimental.pallas import tpu as pltpu

HIDDEN = 16      # SAGEConv out_channels
H_PAD = 128      # lane-dense padded hidden width (output last dim multiple of 128)
TM_MAX = 2048    # dst-node tile (sublane axis of adjacency)
TK_MAX = 2048    # src-node tile (lane axis of adjacency / reduction axis)


def _round_up(x, m):
    return ((x + m - 1) // m) * m


def _cdiv(a, b):
    return -(-a // b)


def _pick_dst_tile(n_dst):
    """Dst tile (multiple of 8).  Aim for >=2 'parallel' i-blocks (dual-TC v7x)."""
    n8 = _round_up(max(n_dst, 1), 8)
    if n8 > 2 * TM_MAX:
        tm = TM_MAX
    else:
        tm = min(max(_round_up(_cdiv(n8, 2), 8), 8), TM_MAX)
    n_dst_p = _round_up(n8, tm)
    return tm, n_dst_p


def _pick_src_tile(n_src):
    """Src tile (multiple of 128, it is the lane axis of the adjacency block)."""
    n128 = _round_up(max(n_src, 1), 128)
    tk = min(TK_MAX, n128)
    n_src_p = _round_up(n128, tk)
    return tk, n_src_p


# ---------------------------------------------------------------------------
# Kernel 1: node-wise linear projection  out = x @ w + b  (zero-padded to H_PAD)
# ---------------------------------------------------------------------------
def _linear_kernel(x_ref, w_ref, b_ref, out_ref):
    out_ref[...] = (
        jnp.dot(x_ref[...], w_ref[...], preferred_element_type=jnp.float32)
        + b_ref[...]
    ).astype(out_ref.dtype)


def linear_pad(x, w, b, n_p, tile_rows, out_dtype):
    """x: [n, f], w: [f, HIDDEN], b: [1, HIDDEN] -> [n_p, H_PAD] (zero padded)."""
    n, f = x.shape
    f_pad = _round_up(f, 128)

    x_p = jnp.zeros((n_p, f_pad), jnp.float32).at[:n, :f].set(x)
    w_p = jnp.zeros((f_pad, H_PAD), jnp.float32).at[:f, :HIDDEN].set(w)
    b_p = jnp.zeros((1, H_PAD), jnp.float32).at[:, :HIDDEN].set(b)

    return pl.pallas_call(
        _linear_kernel,
        out_shape=jax.ShapeDtypeStruct((n_p, H_PAD), out_dtype),
        grid_spec=pltpu.PrefetchScalarGridSpec(
            num_scalar_prefetch=0,
            grid=(n_p // tile_rows,),
            in_specs=[
                pl.BlockSpec((tile_rows, f_pad), lambda i: (i, 0)),
                pl.BlockSpec((f_pad, H_PAD), lambda i: (0, 0)),
                pl.BlockSpec((1, H_PAD), lambda i: (0, 0)),
            ],
            out_specs=pl.BlockSpec((tile_rows, H_PAD), lambda i: (i, 0)),
        ),
        compiler_params=pltpu.CompilerParams(
            dimension_semantics=("parallel",)),
    )(x_p, w_p, b_p)


# ---------------------------------------------------------------------------
# Kernel 2: mean aggregation + root term
#   out = (adj_counts @ h_src) * (1/deg) + h_dst
# bf16 adjacency x bf16 h_src on the MXU, f32 accumulation in the resident
# output block; exact mean normalization + root term in the last-k epilogue.
# ---------------------------------------------------------------------------
def _sage_agg_kernel(adj_ref, h_src_ref, h_dst_ref, dinv_ref, out_ref):
    k = pl.program_id(1)

    @pl.when(k == 0)
    def _():
        out_ref[...] = jnp.zeros_like(out_ref)

    # Native bf16 MXU path (no in-kernel upcast); f32 accumulation into out_ref,
    # whose block is resident across the k axis.
    out_ref[...] += jnp.dot(
        adj_ref[...], h_src_ref[...], preferred_element_type=jnp.float32)

    @pl.when(k == pl.num_programs(1) - 1)
    def _():
        # Epilogue: mean normalization (after accumulation, so exact) + root term.
        out_ref[...] = out_ref[...] * dinv_ref[...] + h_dst_ref[...]


def sage_aggregate(adj_counts, deg_inv, h_src, h_dst, tm, tk):
    n_dst_p, n_src_p = adj_counts.shape
    grid = (n_dst_p // tm, n_src_p // tk)

    # Double-buffered inputs + output; no scratch accumulator.  At tm=tk=2048 this
    # is ~23 MiB, well under v7x's 64 MiB VMEM (and v5e/v6e's 128 MiB).
    vmem_bytes = (
        2 * tm * tk * 2          # adjacency counts (bf16)
        + 2 * tk * H_PAD * 2     # h_src (bf16)
        + 2 * tm * H_PAD * 4     # h_dst (f32)
        + 2 * tm * 128 * 4       # 1/deg (f32, lane-padded)
        + 2 * tm * H_PAD * 4     # output (f32, accumulated in place)
    )
    vmem_limit = int(min(max(int(1.5 * vmem_bytes), 32 * 2**20), 48 * 2**20))

    n_i = n_dst_p // tm
    cost = pl.CostEstimate(
        flops=2 * n_dst_p * n_src_p * H_PAD,
        transcendentals=0,
        bytes_accessed=(adj_counts.size * 2
                        + n_i * h_src.size * 2
                        + h_dst.size * 4
                        + deg_inv.size * 4
                        + n_dst_p * H_PAD * 4),
    )

    return pl.pallas_call(
        _sage_agg_kernel,
        out_shape=jax.ShapeDtypeStruct((n_dst_p, H_PAD), jnp.float32),
        grid_spec=pltpu.PrefetchScalarGridSpec(
            num_scalar_prefetch=0,
            grid=grid,
            in_specs=[
                pl.BlockSpec((tm, tk), lambda i, k: (i, k)),       # adjacency counts
                pl.BlockSpec((tk, H_PAD), lambda i, k: (k, 0)),    # h_src (bf16)
                pl.BlockSpec((tm, H_PAD), lambda i, k: (i, 0)),    # h_dst (+bias, f32)
                pl.BlockSpec((tm, 1), lambda i, k: (i, 0)),        # 1/deg
            ],
            out_specs=pl.BlockSpec((tm, H_PAD), lambda i, k: (i, 0)),
        ),
        compiler_params=pltpu.CompilerParams(
            dimension_semantics=("parallel", "arbitrary"),
            vmem_limit_bytes=vmem_limit,
        ),
        cost_estimate=cost,
    )(adj_counts, h_src, h_dst, deg_inv)


# ---------------------------------------------------------------------------
# Graph glue (scatter to build edge counts / degrees) + full forward pass
# ---------------------------------------------------------------------------
def build_adj_counts(edge_index, n_src_p, n_dst_p):
    """Padded dense [n_dst_p, n_src_p] edge-count matrix built DIRECTLY in bf16
    (exact for counts <= 256; avoids the f32 scatter intermediate + cast) plus
    per-dst 1/in-degree from the edge list (f32, O(E); deg 0 -> 1 like PyG)."""
    src = edge_index[0]
    dst = edge_index[1]
    counts = jnp.zeros((n_dst_p, n_src_p), jnp.bfloat16).at[dst, src].add(
        jnp.ones_like(dst, dtype=jnp.bfloat16))
    deg = jnp.zeros((n_dst_p,), jnp.float32).at[dst].add(1.0).reshape(n_dst_p, 1)
    deg_inv = 1.0 / jnp.maximum(deg, 1.0)
    return counts, deg_inv


def _run_relation(x_src, x_dst, edge_index, rel_params):
    w_l, w_r, b = rel_params
    n_src, n_dst = x_src.shape[0], x_dst.shape[0]
    tm, n_dst_p = _pick_dst_tile(n_dst)
    tk, n_src_p = _pick_src_tile(n_src)

    adj_counts, deg_inv = build_adj_counts(edge_index, n_src_p, n_dst_p)

    zero_b = jnp.zeros((1, HIDDEN), jnp.float32)
    # Neighbor projection (no bias), emitted bf16 for the MXU path + halved stream.
    h_src = linear_pad(x_src, w_l, zero_b, n_src_p, tk, jnp.bfloat16)
    # Root projection + bias folded in, kept f32 for the epilogue.
    h_dst = linear_pad(x_dst, w_r, b, n_dst_p, tm, jnp.float32)

    out_p = sage_aggregate(adj_counts, deg_inv, h_src, h_dst, tm, tk)
    return out_p[:n_dst, :HIDDEN]


def hetero_graph_encoder(x_dict, edge_index_dict, params):
    """Forward pass of HeteroGraphEncoder.conv1 (HeteroConv of two SAGEConvs)."""
    x_acc = x_dict["account"]
    x_txn = x_dict["transaction"]
    out = {}
    # ('account', 'initiates', 'transaction') -> updates 'transaction' nodes
    out["transaction"] = _run_relation(
        x_acc, x_txn,
        edge_index_dict[("account", "initiates", "transaction")],
        params["initiates"])
    # ('transaction', 'receives', 'account') -> updates 'account' nodes
    out["account"] = _run_relation(
        x_txn, x_acc,
        edge_index_dict[("transaction", "receives", "account")],
        params["receives"])
    return out


def init_sage_params(key, in_src, in_dst, out):
    """Deterministic synthetic init for one SAGEConv: lin_l (with bias) and lin_r."""
    k1, k2, k3 = jax.random.split(key, 3)
    scale_l = 1.0 / jnp.sqrt(jnp.float32(in_src))
    scale_r = 1.0 / jnp.sqrt(jnp.float32(in_dst))
    w_l = jax.random.uniform(k1, (in_src, out), jnp.float32, -scale_l, scale_l)
    w_r = jax.random.uniform(k2, (in_dst, out), jnp.float32, -scale_r, scale_r)
    b = jax.random.uniform(k3, (1, out), jnp.float32, -scale_l, scale_l)
    return w_l, w_r, b


def _sage_reference(x_src, x_dst, edge_index, rel_params):
    """Pure-JAX f32 reference (PyG SAGEConv mean semantics) for correctness check."""
    w_l, w_r, b = rel_params
    n_src, n_dst = x_src.shape[0], x_dst.shape[0]
    src, dst = edge_index[0], edge_index[1]
    counts = jnp.zeros((n_dst, n_src), jnp.float32).at[dst, src].add(1.0)
    deg = counts.sum(axis=1, keepdims=True)
    adj_mean = counts / jnp.maximum(deg, 1.0)
    return adj_mean @ x_src @ w_l + b + x_dst @ w_r


if __name__ == "__main__":
    key = jax.random.PRNGKey(0)
    k_xa, k_xt, k_e1, k_e2, k_p1, k_p2 = jax.random.split(key, 6)

    # Small synthetic heterogeneous graph
    n_account, n_transaction = 16, 16
    f_account, f_transaction = 8, 8
    n_edges = 32

    x_dict = {
        "account": jax.random.normal(k_xa, (n_account, f_account), jnp.float32),
        "transaction": jax.random.normal(k_xt, (n_transaction, f_transaction), jnp.float32),
    }

    edge_index_dict = {
        ("account", "initiates", "transaction"): jnp.stack(
            [
                jax.random.randint(jax.random.fold_in(k_e1, 0), (n_edges,), 0, n_account),
                jax.random.randint(jax.random.fold_in(k_e1, 1), (n_edges,), 0, n_transaction),
            ]
        ),
        ("transaction", "receives", "account"): jnp.stack(
            [
                jax.random.randint(jax.random.fold_in(k_e2, 0), (n_edges,), 0, n_transaction),
                jax.random.randint(jax.random.fold_in(k_e2, 1), (n_edges,), 0, n_account),
            ]
        ),
    }

    params = {
        "initiates": init_sage_params(k_p1, f_account, f_transaction, HIDDEN),
        "receives": init_sage_params(k_p2, f_transaction, f_account, HIDDEN),
    }

    out = hetero_graph_encoder(x_dict, edge_index_dict, params)
    out = jax.block_until_ready(out)

    assert out["transaction"].shape == (n_transaction, HIDDEN)
    assert out["account"].shape == (n_account, HIDDEN)

    # Correctness check against a pure-JAX f32 reference of the PyG semantics.
    # Tolerance loosened to ~1e-2: neighbor features travel through the MXU in bf16.
    ref_txn = _sage_reference(
        x_dict["account"], x_dict["transaction"],
        edge_index_dict[("account", "initiates", "transaction")], params["initiates"])
    ref_acc = _sage_reference(
        x_dict["transaction"], x_dict["account"],
        edge_index_dict[("transaction", "receives", "account")], params["receives"])
    assert jnp.allclose(out["transaction"], ref_txn, rtol=2e-2, atol=2e-2)
    assert jnp.allclose(out["account"], ref_acc, rtol=2e-2, atol=2e-2)

    print("KERNEL_OK")
</pallas_src>

<mosaic_0001>
module attributes {stable_mosaic.version = 11 : i64} {
  func.func @_linear_kernel(%arg0: i32, %arg1: memref<128x128xf32, #tpu.memory_space<vmem>>, %arg2: memref<128x128xf32, #tpu.memory_space<vmem>>, %arg3: memref<1x128xf32, #tpu.memory_space<vmem>>, %arg4: memref<128x128xbf16, #tpu.memory_space<vmem>>) attributes {dimension_semantics = [#tpu.dimension_semantics<parallel>], iteration_bounds = array<i64: 1>, scalar_prefetch = 0 : i64, scratch_operands = 0 : i64, tpu.core_type = #tpu.core_type<tc>, window_params = [{transform_indices = @transform_0, window_bounds = array<i64: 128, 128>}, {pipeline_mode = #tpu.pipeline_mode<synchronous>, transform_indices = @transform_1, window_bounds = array<i64: 128, 128>}, {pipeline_mode = #tpu.pipeline_mode<synchronous>, transform_indices = @transform_2, window_bounds = array<i64: 1, 128>}, {transform_indices = @transform_3, window_bounds = array<i64: 128, 128>}]} {
    %c0 = arith.constant 0 : index
    %c0_0 = arith.constant 0 : index
    %0 = vector.load %arg1[%c0, %c0_0] : memref<128x128xf32, #tpu.memory_space<vmem>>, vector<128x128xf32>
    %c0_1 = arith.constant 0 : index
    %c0_2 = arith.constant 0 : index
    %1 = vector.load %arg2[%c0_1, %c0_2] : memref<128x128xf32, #tpu.memory_space<vmem>>, vector<128x128xf32>
    %cst = arith.constant dense<0.000000e+00> : vector<128x128xf32>
    %2 = tpu.matmul %0, %1, %cst {dimension_numbers = #tpu.dot_dimension_numbers<[1], [0], [0], [1], [0, 0, 1, 1], [], []>} : vector<128x128xf32>, vector<128x128xf32>, vector<128x128xf32> -> vector<128x128xf32>
    %c0_3 = arith.constant 0 : index
    %c0_4 = arith.constant 0 : index
    %3 = vector.load %arg3[%c0_3, %c0_4] : memref<1x128xf32, #tpu.memory_space<vmem>>, vector<1x128xf32>
    %4 = vector.broadcast %3 : vector<1x128xf32> to vector<128x128xf32>
    %5 = arith.addf %2, %4 : vector<128x128xf32>
    %6 = arith.truncf %5 : vector<128x128xf32> to vector<128x128xbf16>
    %c0_5 = arith.constant 0 : index
    %c0_6 = arith.constant 0 : index
    %7 = vector.load %arg4[%c0_5, %c0_6] : memref<128x128xbf16, #tpu.memory_space<vmem>>, vector<128x128xbf16>
    tpu.vector_store %arg4[%c0_5, %c0_6], %6 {strides = array<i32>} : memref<128x128xbf16, #tpu.memory_space<vmem>>, vector<128x128xbf16>,
    return
  }
  func.func @transform_0(%arg0: i32) -> (i32, i32) {
    %c0_i32 = arith.constant 0 : i32
    %c0_i32_0 = arith.constant 0 : i32
    return %arg0, %c0_i32 : i32, i32
  }
  func.func @transform_1(%arg0: i32) -> (i32, i32) {
    %c0_i32 = arith.constant 0 : i32
    %c0_i32_0 = arith.constant 0 : i32
    %c0_i32_1 = arith.constant 0 : i32
    return %c0_i32, %c0_i32_0 : i32, i32
  }
  func.func @transform_2(%arg0: i32) -> (i32, i32) {
    %c0_i32 = arith.constant 0 : i32
    %c0_i32_0 = arith.constant 0 : i32
    %c0_i32_1 = arith.constant 0 : i32
    return %c0_i32, %c0_i32_0 : i32, i32
  }
  func.func @transform_3(%arg0: i32) -> (i32, i32) {
    %c0_i32 = arith.constant 0 : i32
    %c0_i32_0 = arith.constant 0 : i32
    return %arg0, %c0_i32 : i32, i32
  }
}

</mosaic_0001>

<llo_original>
// kernel: tpu_custom_call.1
$region0: #{tpu_custom_call.1}
  #allocation0 [shape = 'u32[]', space=smem, size = 0x4, offset = 0x4, fixed_abs, tag = 'smem constant byte address 0x4 - core index']
  #allocation1 [shape = 'u32[72,128]{1,0:T(1,128)}', space=vmem, size = 0x9000, scoped, tag = 'internal scratch']
  %s0 = inlined_call_operand.hbm [shape: f32[128,128], index: 0, kind: input, shape index: {}]
  %s1 = inlined_call_operand.hbm [shape: f32[128,128], index: 1, kind: input, shape index: {}]
  %s2 = inlined_call_operand.vmem [shape: f32[1,128], index: 2, kind: input, shape index: {}]
  %s3 = inlined_call_operand.hbm [shape: bf16[128,128], index: 3, kind: output, shape index: {}]
  %s4 = sld [smem:[#allocation0]]
  $region30: #{tpu_custom_call.1} parent=0
    _
  %s6 = ssub.s32 1, %s4
  %s7 = scalar_select 0, %s6, %s4
  $region1: #{tpu_custom_call.1} parent=0
    #allocation2 [shape = 'u8[65536]{0}', space=vmem, size = 0x10000, scoped, tag = 'input window, operand 0, single buffered']
    #allocation3 [shape = 's32[1]{0}', space=sflag, size = 0x4, scoped, tag = 'scoped memory for tpu_custom_call.1']
    #allocation4 [shape = 's32[1]{0}', space=sflag, size = 0x4, scoped, tag = 'scoped memory for tpu_custom_call.1']
    #allocation5 [shape = 'u8[65536]{0}', space=vmem, size = 0x10000, scoped, tag = 'input window, operand 1, single buffered']
    #allocation6 [shape = 's32[1]{0}', space=sflag, size = 0x4, scoped, tag = 'scoped memory for tpu_custom_call.1']
    #allocation7 [shape = 'u8[32768]{0}', space=vmem, size = 0x8000, scoped, tag = 'output window, operand 0, single buffered']
    %8 = vsyncpa [#allocation3], 0
    %9 = vsyncpa [#allocation6], 0
    %10 = vsyncpa [#allocation4], 0
    // Predicated region
    $region2: #{tpu_custom_call.1} parent=1 // pred_check
      _
    $region3: #{tpu_custom_call.1} parent=1 // pred_check_branch
      %12 = sbr.rel (0) target = $region5
    $region4: #{tpu_custom_call.1} parent=1 // pred_region
      %14 = vsyncadd [#allocation3], 0
      %s15 = sshll.u32 %s0, 4
      %s16 = int_to_ptr.hbm [resolvable:$true] %s15
      %s17 = sshll.u32 [#allocation2], 4
      %s18 = int_to_ptr.vmem [resolvable:$true] %s17
      %23 = dma.hbm_to_vmem [thread:$0]  %s16, 2048, %s18, [#allocation3], 128, 128, 8
    $region5: #{tpu_custom_call.1} parent=1 // pred_fallthru
      _
    // Predicated region
    $region6: #{tpu_custom_call.1} parent=1 // pred_check
      _
    $region7: #{tpu_custom_call.1} parent=1 // pred_check_branch
      %25 = sbr.rel (0) target = $region9
    $region8: #{tpu_custom_call.1} parent=1 // pred_region
      %27 = vsyncadd [#allocation6], 0
      %s28 = sshll.u32 %s1, 4
      %s29 = int_to_ptr.hbm [resolvable:$true] %s28
      %s30 = sshll.u32 [#allocation5], 4
      %s31 = int_to_ptr.vmem [resolvable:$true] %s30
      %36 = dma.hbm_to_vmem [thread:$0]  %s29, 2048, %s31, [#allocation6], 128, 128, 8
    $region9: #{tpu_custom_call.1} parent=1 // pred_fallthru
      _
    // Predicated region
    $region10: #{tpu_custom_call.1} parent=1 // pred_check
      _
    $region11: #{tpu_custom_call.1} parent=1 // pred_check_branch
      %38 = sbr.rel (0) target = $region13
    $region12: #{tpu_custom_call.1} parent=1 // pred_region
      _
    $region13: #{tpu_custom_call.1} parent=1 // pred_fallthru
      _
    // Predicated region
    $region14: #{tpu_custom_call.1} parent=1 // pred_check
      _
    $region15: #{tpu_custom_call.1} parent=1 // pred_check_branch
      %40 = sbr.rel (0) target = $region17
    $region16: #{tpu_custom_call.1} parent=1 // pred_region
      %42 = dma.done [#allocation3], 2048
    $region17: #{tpu_custom_call.1} parent=1 // pred_fallthru
      _
    // Predicated region
    $region18: #{tpu_custom_call.1} parent=1 // pred_check
      _
    $region19: #{tpu_custom_call.1} parent=1 // pred_check_branch
      %44 = sbr.rel (0) target = $region21
    $region20: #{tpu_custom_call.1} parent=1 // pred_region
      %46 = dma.done [#allocation6], 2048
    $region21: #{tpu_custom_call.1} parent=1 // pred_fallthru
      _
    %v47 = vld [vmem:[#allocation2] sm:$0xff]
    %v48 = vld [vmem:[#allocation2 + $0x8] sm:$0xff]
    %v49 = vld [vmem:[#allocation2 + $0x10] sm:$0xff]
    %v50 = vld [vmem:[#allocation2 + $0x18] sm:$0xff]
    %v51 = vld [vmem:[#allocation2 + $0x20] sm:$0xff]
    %v52 = vld [vmem:[#allocation2 + $0x28] sm:$0xff]
    %v53 = vld [vmem:[#allocation2 + $0x30] sm:$0xff]
    %v54 = vld [vmem:[#allocation2 + $0x38] sm:$0xff]
    %v55 = vld [vmem:[#allocation2 + $0x40] sm:$0xff]
    %v56 = vld [vmem:[#allocation2 + $0x48] sm:$0xff]
    %v57 = vld [vmem:[#allocation2 + $0x50] sm:$0xff]
    %v58 = vld [vmem:[#allocation2 + $0x58] sm:$0xff]
    %v59 = vld [vmem:[#allocation2 + $0x60] sm:$0xff]
    %v60 = vld [vmem:[#allocation2 + $0x68] sm:$0xff]
    %v61 = vld [vmem:[#allocation2 + $0x70] sm:$0xff]
    %v62 = vld [vmem:[#allocation2 + $0x78] sm:$0xff]
    %v63 = vld [vmem:[#allocation5] sm:$0xff]
    %v64 = vld [vmem:[#allocation5 + $0x8] sm:$0xff]
    %v65 = vld [vmem:[#allocation5 + $0x10] sm:$0xff]
    %v66 = vld [vmem:[#allocation5 + $0x18] sm:$0xff]
    %v67 = vld [vmem:[#allocation5 + $0x20] sm:$0xff]
    %v68 = vld [vmem:[#allocation5 + $0x28] sm:$0xff]
    %v69 = vld [vmem:[#allocation5 + $0x30] sm:$0xff]
    %v70 = vld [vmem:[#allocation5 + $0x38] sm:$0xff]
    %v71 = vld [vmem:[#allocation5 + $0x40] sm:$0xff]
    %v72 = vld [vmem:[#allocation5 + $0x48] sm:$0xff]
    %v73 = vld [vmem:[#allocation5 + $0x50] sm:$0xff]
    %v74 = vld [vmem:[#allocation5 + $0x58] sm:$0xff]
    %v75 = vld [vmem:[#allocation5 + $0x60] sm:$0xff]
    %v76 = vld [vmem:[#allocation5 + $0x68] sm:$0xff]
    %v77 = vld [vmem:[#allocation5 + $0x70] sm:$0xff]
    %v78 = vld [vmem:[#allocation5 + $0x78] sm:$0xff]
    %v79 = vld [vmem:[%s2] sm:$0x1]
    %v81 = vperm.slane %v79, 0
    %83 = vmatpush.msra.mxu0 %v78
    %84 = vmatpush.msra.mxu0 %v77
    %85 = vmatpush.msra.mxu0 %v76
    %86 = vmatpush.msra.mxu0 %v75
    %87 = vmatpush.msra.mxu0 %v74
    %88 = vmatpush.msra.mxu0 %v73
    %89 = vmatpush.msra.mxu0 %v72
    %90 = vmatpush.msra.mxu0 %v71
    %91 = vmatpush.msra.mxu0 %v70
    %92 = vmatpush.msra.mxu0 %v69
    %93 = vmatpush.msra.mxu0 %v68
    %94 = vmatpush.msra.mxu0 %v67
    %95 = vmatpush.msra.mxu0 %v66
    %96 = vmatpush.msra.mxu0 %v65
    %97 = vmatpush.msra.mxu0 %v64
    %98 = vmatpush.msra.mxu0 %v63
    %99 = vmatmul.f32.gmra.mxu0 %v47
    %v100 = vpop.f32.mrf.mxu0
    %v101 = vadd.f32 %v81, %v100
    %102 = vmatmul.f32.gmra.mxu0 %v48
    %v103 = vpop.f32.mrf.mxu0
    %v104 = vadd.f32 %v81, %v103
    %105 = vmatmul.f32.gmra.mxu0 %v49
    %v106 = vpop.f32.mrf.mxu0
    %v107 = vadd.f32 %v81, %v106
    %108 = vmatmul.f32.gmra.mxu0 %v50
    %v109 = vpop.f32.mrf.mxu0
    %v110 = vadd.f32 %v81, %v109
    %111 = vmatmul.f32.gmra.mxu0 %v51
    %v112 = vpop.f32.mrf.mxu0
    %v113 = vadd.f32 %v81, %v112
    %114 = vmatmul.f32.gmra.mxu0 %v52
    %v115 = vpop.f32.mrf.mxu0
    %v116 = vadd.f32 %v81, %v115
    %117 = vmatmul.f32.gmra.mxu0 %v53
    %v118 = vpop.f32.mrf.mxu0
    %v119 = vadd.f32 %v81, %v118
    %120 = vmatmul.f32.gmra.mxu0 %v54
    %v121 = vpop.f32.mrf.mxu0
    %v122 = vadd.f32 %v81, %v121
    %123 = vmatmul.f32.gmra.mxu0 %v55
    %v124 = vpop.f32.mrf.mxu0
    %v125 = vadd.f32 %v81, %v124
    %126 = vmatmul.f32.gmra.mxu0 %v56
    %v127 = vpop.f32.mrf.mxu0
    %v128 = vadd.f32 %v81, %v127
    %129 = vmatmul.f32.gmra.mxu0 %v57
    %v130 = vpop.f32.mrf.mxu0
    %v131 = vadd.f32 %v81, %v130
    %132 = vmatmul.f32.gmra.mxu0 %v58
    %v133 = vpop.f32.mrf.mxu0
    %v134 = vadd.f32 %v81, %v133
    %135 = vmatmul.f32.gmra.mxu0 %v59
    %v136 = vpop.f32.mrf.mxu0
    %v137 = vadd.f32 %v81, %v136
    %138 = vmatmul.f32.gmra.mxu0 %v60
    %v139 = vpop.f32.mrf.mxu0
    %v140 = vadd.f32 %v81, %v139
    %141 = vmatmul.f32.gmra.mxu0 %v61
    %v142 = vpop.f32.mrf.mxu0
    %v143 = vadd.f32 %v81, %v142
    %144 = vmatmul.f32.gmra.mxu0 %v62
    %v145 = vpop.f32.mrf.mxu0
    %v146 = vadd.f32 %v81, %v145
    %147 = vdwg.mxu0
    %v148 = vpack.c.bf16 %v101, %v101
    %v149 = vpack.c.bf16 %v104, %v104
    %v150 = vpack.c.bf16 %v107, %v107
    %v151 = vpack.c.bf16 %v110, %v110
    %v152 = vpack.c.bf16 %v113, %v113
    %v153 = vpack.c.bf16 %v116, %v116
    %v154 = vpack.c.bf16 %v119, %v119
    %v155 = vpack.c.bf16 %v122, %v122
    %v156 = vpack.c.bf16 %v125, %v125
    %v157 = vpack.c.bf16 %v128, %v128
    %v158 = vpack.c.bf16 %v131, %v131
    %v159 = vpack.c.bf16 %v134, %v134
    %v160 = vpack.c.bf16 %v137, %v137
    %v161 = vpack.c.bf16 %v140, %v140
    %v162 = vpack.c.bf16 %v143, %v143
    %v163 = vpack.c.bf16 %v146, %v146
    %164 = vst [vmem:[#allocation7] sm:$0xf] %v148
    %165 = vst [vmem:[#allocation7 + $0x4] sm:$0xf] %v149
    %166 = vst [vmem:[#allocation7 + $0x8] sm:$0xf] %v150
    %167 = vst [vmem:[#allocation7 + $0xc] sm:$0xf] %v151
    %168 = vst [vmem:[#allocation7 + $0x10] sm:$0xf] %v152
    %169 = vst [vmem:[#allocation7 + $0x14] sm:$0xf] %v153
    %170 = vst [vmem:[#allocation7 + $0x18] sm:$0xf] %v154
    %171 = vst [vmem:[#allocation7 + $0x1c] sm:$0xf] %v155
    %172 = vst [vmem:[#allocation7 + $0x20] sm:$0xf] %v156
    %173 = vst [vmem:[#allocation7 + $0x24] sm:$0xf] %v157
    %174 = vst [vmem:[#allocation7 + $0x28] sm:$0xf] %v158
    %175 = vst [vmem:[#allocation7 + $0x2c] sm:$0xf] %v159
    %176 = vst [vmem:[#allocation7 + $0x30] sm:$0xf] %v160
    %177 = vst [vmem:[#allocation7 + $0x34] sm:$0xf] %v161
    %178 = vst [vmem:[#allocation7 + $0x38] sm:$0xf] %v162
    %179 = vst [vmem:[#allocation7 + $0x3c] sm:$0xf] %v163
    // Predicated region
    $region22: #{tpu_custom_call.1} parent=1 // pred_check
      _
    $region23: #{tpu_custom_call.1} parent=1 // pred_check_branch
      %181 = sbr.rel (0) target = $region25
    $region24: #{tpu_custom_call.1} parent=1 // pred_region
      %183 = vsyncadd [#allocation4], 0
      %s184 = sshll.u32 [#allocation7], 4
      %s185 = int_to_ptr.vmem [resolvable:$true] %s184
      %s186 = sshll.u32 %s3, 4
      %s187 = int_to_ptr.hbm [resolvable:$true] %s186
      %192 = dma.vmem_to_hbm [thread:$0]  %s185, 1024, %s187, [#allocation4], 64, 64, 4
    $region25: #{tpu_custom_call.1} parent=1 // pred_fallthru
      _
    // Predicated region
    $region26: #{tpu_custom_call.1} parent=1 // pred_check
      _
    $region27: #{tpu_custom_call.1} parent=1 // pred_check_branch
      %194 = sbr.rel (0) target = $region29
    $region28: #{tpu_custom_call.1} parent=1 // pred_region
      %196 = dma.done [#allocation4], 1024
    $region29: #{tpu_custom_call.1} parent=1 // pred_fallthru
      _
    %197 = vsyncpa [#allocation3], 1
    %198 = vsyncpa [#allocation6], 1
    %199 = vsyncpa [#allocation4], 1

</llo_original>
